<compile_context>
chip_gen: v6e
topology: v6e:2x2x1
jax: 0.10.0
libtpu: 0.0.40
codegen_flags: <defaults>
</compile_context>

<pallas_src>
import functools
import math

import jax
import jax.numpy as jnp
import numpy as np
from jax import lax
from jax.experimental import pallas as pl
from jax.experimental.pallas import tpu as pltpu

_GELU_C = math.sqrt(2.0 / math.pi)


def _gelu_tanh(y):
    return 0.5 * y * (1.0 + jnp.tanh(_GELU_C * (y + 0.044715 * y * y * y)))


def _round_up(x, m):
    return ((x + m - 1) // m) * m


def _col_tile(*dims, target=512):
    """Largest multiple of 128 <= target dividing all dims (fallback: gcd)."""
    g = 0
    for d in dims:
        g = math.gcd(g, int(d))
    best = None
    t = 128
    while t <= min(g, target):
        if g % t == 0:
            best = t
        t += 128
    return best if best is not None else g


def _mosaic_params(semantics, vmem_est_bytes):
    limit = int(min(2 * vmem_est_bytes + (16 << 20), 128 << 20))
    return pltpu.CompilerParams(dimension_semantics=semantics,
                                vmem_limit_bytes=limit)


# ----------------------------- Pallas kernels ------------------------------ #

def _temb_emb_kernel(t_ref, w_ref, b_ref, o_ref):
    """emb = Linear(SiLU(temb)); tiny [B*P, D] @ [D, 3D] (f32 for accuracy)."""
    bz, p, d = t_ref.shape
    t = t_ref[...].astype(jnp.float32)
    t = t * jax.nn.sigmoid(t)                                   # SiLU in f32
    y = jnp.dot(t.reshape(bz * p, d), w_ref[...],
                preferred_element_type=jnp.float32) + b_ref[...].astype(jnp.float32)
    o_ref[...] = y.reshape(bz, p, -1).astype(o_ref.dtype)


def _adaln_fused_gemm_kernel(x_ref, sid_ref, shift_ref, scale_ref, w_ref, b_ref,
                             y_ref, xn_ref, *, n_stages, nq, eps=1e-6):
    """Fused AdaLN modulation + single N-tiled bf16 GEMM over [Wq|Wk|Wv|Wmlp].

    grid = (B, S_pad/tm, N/tn), N innermost ("arbitrary").  At n==0 the
    layernormed, per-row stage-modulated activation is written once to a bf16
    VMEM scratch and reused for all weight-column tiles.  Columns with n >= nq
    get GELU(tanh) (MLP branch).  One merged output -> written every step.
    """
    n = pl.program_id(2)

    @pl.when(n == 0)
    def _():
        x = x_ref[0].astype(jnp.float32)                         # (tm, D)
        mean = jnp.mean(x, axis=-1, keepdims=True)
        var = jnp.mean((x - mean) ** 2, axis=-1, keepdims=True)
        xn = (x - mean) * lax.rsqrt(var + eps)
        sid = sid_ref[...]                                       # (tm, 1) int32
        sh = jnp.broadcast_to(shift_ref[0, 0, :][None, :], xn.shape)
        sc = jnp.broadcast_to(scale_ref[0, 0, :][None, :], xn.shape)
        for p in range(1, n_stages):                             # per-row stage select
            m = sid == p
            sh = jnp.where(m, shift_ref[0, p, :][None, :], sh)
            sc = jnp.where(m, scale_ref[0, p, :][None, :], sc)
        xn_ref[...] = (xn * (1.0 + sc) + sh).astype(xn_ref.dtype)

    # bf16 x bf16 -> f32 accumulate (native MXU rate)
    y = jnp.dot(xn_ref[...], w_ref[...], preferred_element_type=jnp.float32)
    y = y + b_ref[0].astype(jnp.float32)

    @pl.when(n < nq)
    def _():
        y_ref[0] = y.astype(y_ref.dtype)

    @pl.when(n >= nq)
    def _():
        y_ref[0] = _gelu_tanh(y).astype(y_ref.dtype)


def _attn_stage_kernel(mix_ref, mask_ref, ra_ref, rb_ref, gq_ref, gk_ref, o_ref,
                       qkv_vmem, dma_sem, *, heads, head_dim, seq_off, scale,
                       eps=1e-6):
    """Per-stage SDPA, all heads per grid step, RMSNorm(q/k) + RoPE fused.

    The stage's qkv columns are fetched with one manual HBM->VMEM window DMA at
    an arbitrary (non tile-aligned) token offset; per-head outputs are stored
    directly into o_ref slices (no concat, no per-head accumulation list).
    q/k columns were pre-permuted per head (evens then odds) so the RoPE pair
    rotation is a contiguous half swap; scores are invariant under that
    permutation and v is untouched, so the output matches the reference layout.
    """
    b = pl.program_id(0)
    D = heads * head_dim
    L = o_ref.shape[1]
    half = head_dim // 2

    cp = pltpu.make_async_copy(
        mix_ref.at[b, pl.ds(seq_off, L), pl.ds(0, 3 * D)], qkv_vmem, dma_sem)
    cp.start()
    cp.wait()

    qkv = qkv_vmem[...]                                   # (L, 3D) bf16
    mask = mask_ref[0, 0].astype(jnp.float32)             # (L, L) additive mask
    ra = ra_ref[...]                                      # (L, Dh) rope coeff A
    rb = rb_ref[...]                                      # (L, Dh) rope coeff B
    gq = gq_ref[...].astype(jnp.float32)                  # (1, Dh)
    gk = gk_ref[...].astype(jnp.float32)

    def _norm_rope(x, g):
        xf = x.astype(jnp.float32)
        var = jnp.mean(xf * xf, axis=-1, keepdims=True)
        xn = xf * lax.rsqrt(var + eps) * g
        if head_dim % 128 == 0:
            xs = pltpu.roll(xn, shift=half, axis=-1)      # XLU rotate (free slot)
        else:
            xs = jnp.concatenate([xn[:, half:], xn[:, :half]], axis=-1)
        return (ra * xn + rb * xs).astype(jnp.bfloat16)

    # TODO(synk): KV-tiled online-softmax + head grid axis for production L.
    for h in range(heads):
        lo = h * head_dim
        qh = _norm_rope(qkv[:, lo:lo + head_dim], gq)
        kh = _norm_rope(qkv[:, D + lo:D + lo + head_dim], gk)
        vh = qkv[:, 2 * D + lo:2 * D + lo + head_dim]

        s = lax.dot_general(qh, kh, (((1,), (1,)), ((), ())),
                            preferred_element_type=jnp.float32) * scale + mask
        s = s - jnp.max(s, axis=-1, keepdims=True)
        p = jnp.exp(s)
        p = p * pl.reciprocal(jnp.sum(p, axis=-1, keepdims=True), approx=True)
        o_ref[0, :, lo:lo + head_dim] = jnp.dot(
            p.astype(jnp.bfloat16), vh,
            preferred_element_type=jnp.float32).astype(o_ref.dtype)


def _proj_residual_kernel(attn_ref, mix_ref, w_ref, b_ref, sid_ref, gate_ref,
                          res_ref, o_ref, acc_ref, *, n_stages, nk_attn):
    """out = residual + gate * (attn @ W_attn + mlp @ W_mlp + b).

    grid = (B, S_pad/tm, nK); a single fused bf16 [D+Dm, D] weight stream is
    contracted K-tile by K-tile into one f32 VMEM accumulator: the first
    nk_attn K tiles contract the attention branch, the rest contract the MLP
    columns of the merged activation -> no [attn | mlp] concat ever touches HBM.
    """
    k = pl.program_id(2)
    nk = pl.num_programs(2)

    @pl.when(k == 0)
    def _():
        acc_ref[...] = jnp.zeros_like(acc_ref)

    @pl.when(k < nk_attn)
    def _():
        acc_ref[...] += jnp.dot(attn_ref[0], w_ref[...],
                                preferred_element_type=jnp.float32)

    @pl.when(k >= nk_attn)
    def _():
        acc_ref[...] += jnp.dot(mix_ref[0], w_ref[...],
                                preferred_element_type=jnp.float32)

    @pl.when(k == nk - 1)
    def _():
        sid = sid_ref[...]                                       # (tm, 1) int32
        g = jnp.broadcast_to(gate_ref[0, 0, :][None, :], acc_ref.shape)
        for p in range(1, n_stages):
            g = jnp.where(sid == p, gate_ref[0, p, :][None, :], g)
        y = acc_ref[...] + b_ref[0].astype(jnp.float32)
        out = res_ref[0].astype(jnp.float32) + g * y
        o_ref[0] = out.astype(o_ref.dtype)
        # torch clips to [-65504, 65504] only for fp16 inputs; f32 path -> no-op.


# --------------------------- weight / rope prep ----------------------------- #

def prepare_fused_params(params, heads, head_dim, compute_dtype=jnp.bfloat16):
    """Fuse [Wq|Wk|Wv|Wmlp] along Dout (bf16), keep proj_out as ONE fused
    [D+Dm, D] bf16 stream, and apply the per-head half-split column permutation
    for in-kernel RoPE."""
    Dh = head_dim
    perm_head = np.concatenate([np.arange(0, Dh, 2), np.arange(1, Dh, 2)])
    perm = np.concatenate([h * Dh + perm_head for h in range(heads)])

    (wq, bq), (wk, bk), (wv, bv) = params["to_q"], params["to_k"], params["to_v"]
    wm, bm = params["proj_mlp"]
    w_fused = jnp.concatenate([wq[:, perm], wk[:, perm], wv, wm],
                              axis=1).astype(compute_dtype)
    b_fused = jnp.concatenate([bq[:, perm], bk[:, perm], bv, bm],
                              axis=1).astype(jnp.float32)

    wo, bo = params["proj_out"]
    return {
        "norm_linear": params["norm_linear"],
        "w_fused": w_fused,
        "b_fused": b_fused,
        "w_out": wo.astype(compute_dtype),                  # [(D + Dm), D]
        "b_out": bo.astype(jnp.float32),
        "gq": params["norm_q_w"][:, perm_head].astype(jnp.float32),
        "gk": params["norm_k_w"][:, perm_head].astype(jnp.float32),
        "mlp_dim": int(wm.shape[1]),
    }


def _rope_coeffs(freqs_cis, length, head_dim):
    """Per-stage RoPE coefficients in half-split layout: out = A*x + B*swap(x)."""
    if freqs_cis is None:
        return (jnp.ones((length, head_dim), jnp.float32),
                jnp.zeros((length, head_dim), jnp.float32))
    fc = freqs_cis[0, :, 0].astype(jnp.float32)                 # (L, Dh/2, 2, 2)
    a = jnp.concatenate([fc[..., 0, 0], fc[..., 1, 1]], axis=-1)
    b = jnp.concatenate([fc[..., 0, 1], fc[..., 1, 0]], axis=-1)
    return a, b


# --------------------------------- forward ---------------------------------- #

def flux_single_block_forward(prep, hidden_states, temb, hidden_length,
                              attention_mask, image_rotary_emb, heads, head_dim):
    B, S, D = hidden_states.shape
    P = temb.shape[1]
    assert D == heads * head_dim
    assert sum(int(l) for l in hidden_length) == S
    out_dtype = hidden_states.dtype
    cdt = jnp.bfloat16

    wn, bn = prep["norm_linear"]
    Dm = prep["mlp_dim"]
    N = 3 * D + Dm

    # ---- AdaLayerNormZeroSingle: emb = Linear(SiLU(temb)) ----
    emb = pl.pallas_call(
        _temb_emb_kernel,
        out_shape=jax.ShapeDtypeStruct((B, P, 3 * D), jnp.float32),
    )(temb, wn, bn)
    shift = emb[..., 0:D]
    scale = emb[..., D:2 * D]
    gate = emb[..., 2 * D:3 * D]

    # ---- tiling (tm decoupled from hidden_length; stages handled per row) ----
    tm = 256 if S >= 256 else _round_up(S, 8)
    S_pad = _round_up(S, tm)
    nS = S_pad // tm
    tn = _col_tile(3 * D, Dm)
    nq = (3 * D) // tn
    nN = N // tn
    tk = _col_tile(D, Dm)
    nk_attn = D // tk
    nk = nk_attn + Dm // tk

    x_pad = hidden_states
    if S_pad != S:
        x_pad = jnp.pad(hidden_states, ((0, 0), (0, S_pad - S), (0, 0)))

    sid_np = np.zeros((S_pad, 1), np.int32)
    off = 0
    for i, L in enumerate(hidden_length):
        sid_np[off:off + int(L), 0] = i
        off += int(L)
    sid = jnp.asarray(sid_np)

    # ---- fused AdaLN + [Q|K|V|MLP] bf16 GEMM (+GELU on MLP columns) ----
    est1 = (2 * tm * D * hidden_states.dtype.itemsize + 2 * tm * 4
            + 4 * P * D * 4 + 2 * D * tn * 2 + 2 * tn * 4
            + 2 * tm * tn * 2 + tm * D * 2)
    ymix = pl.pallas_call(
        functools.partial(_adaln_fused_gemm_kernel,
                          n_stages=len(hidden_length), nq=nq),
        out_shape=jax.ShapeDtypeStruct((B, S_pad, N), cdt),
        grid=(B, nS, nN),
        in_specs=[
            pl.BlockSpec((1, tm, D), lambda b, s, n: (b, s, 0)),
            pl.BlockSpec((tm, 1), lambda b, s, n: (s, 0)),
            pl.BlockSpec((1, P, D), lambda b, s, n: (b, 0, 0)),
            pl.BlockSpec((1, P, D), lambda b, s, n: (b, 0, 0)),
            pl.BlockSpec((D, tn), lambda b, s, n: (0, n)),
            pl.BlockSpec((1, tn), lambda b, s, n: (0, n)),
        ],
        out_specs=pl.BlockSpec((1, tm, tn), lambda b, s, n: (b, s, n)),
        scratch_shapes=[pltpu.VMEM((tm, D), cdt)],
        compiler_params=_mosaic_params(("parallel", "parallel", "arbitrary"), est1),
    )(x_pad, sid, shift, scale, prep["w_fused"], prep["b_fused"])

    # ---- per-stage attention (all heads per grid step; RMSNorm + RoPE fused) ----
    sdpa_scale = 1.0 / math.sqrt(head_dim)
    out_segs = []
    off = 0
    for i_p, L in enumerate(hidden_length):
        L = int(L)
        fc = None if image_rotary_emb is None else image_rotary_emb[i_p]
        ra, rb = _rope_coeffs(fc, L, head_dim)
        mask = attention_mask[i_p].astype(cdt)
        est_a = (L * 3 * D * 2 + 2 * L * L * 2 + 4 * L * head_dim * 4
                 + 2 * L * D * 2 + heads * (L * L * 4 + 4 * L * head_dim * 4))
        o = pl.pallas_call(
            functools.partial(_attn_stage_kernel, heads=heads, head_dim=head_dim,
                              seq_off=off, scale=sdpa_scale),
            out_shape=jax.ShapeDtypeStruct((B, L, D), cdt),
            grid=(B,),
            in_specs=[
                pl.BlockSpec(memory_space=pl.ANY),                 # merged qkv/mlp
                pl.BlockSpec((1, 1, L, L), lambda b: (b, 0, 0, 0)),
                pl.BlockSpec((L, head_dim), lambda b: (0, 0)),
                pl.BlockSpec((L, head_dim), lambda b: (0, 0)),
                pl.BlockSpec((1, head_dim), lambda b: (0, 0)),
                pl.BlockSpec((1, head_dim), lambda b: (0, 0)),
            ],
            out_specs=pl.BlockSpec((1, L, D), lambda b: (b, 0, 0)),
            scratch_shapes=[pltpu.VMEM((L, 3 * D), cdt),
                            pltpu.SemaphoreType.DMA(())],
            compiler_params=_mosaic_params(("parallel",), est_a),
        )(ymix, mask, ra, rb, prep["gq"], prep["gk"])
        out_segs.append(o)
        off += L
    attn_out = out_segs[0] if len(out_segs) == 1 else jnp.concatenate(out_segs, axis=1)
    if S_pad != S:
        attn_out = jnp.pad(attn_out, ((0, 0), (0, S_pad - S), (0, 0)))

    # ---- fused proj_out (single K-tiled fused weight stream) + gate + residual ----
    est2 = (4 * tm * tk * 2 + 2 * tk * D * 2 + 2 * D * 4 + 2 * tm * 4
            + 2 * P * D * 4 + 2 * tm * D * 4 + 2 * tm * D * 4 + tm * D * 4)
    out_pad = pl.pallas_call(
        functools.partial(_proj_residual_kernel,
                          n_stages=len(hidden_length), nk_attn=nk_attn),
        out_shape=jax.ShapeDtypeStruct((B, S_pad, D), out_dtype),
        grid=(B, nS, nk),
        in_specs=[
            pl.BlockSpec((1, tm, tk),
                         lambda b, s, k: (b, s, jnp.minimum(k, nk_attn - 1))),
            pl.BlockSpec((1, tm, tk),
                         lambda b, s, k: (b, s, 3 * nk_attn + jnp.maximum(k - nk_attn, 0))),
            pl.BlockSpec((tk, D), lambda b, s, k: (k, 0)),
            pl.BlockSpec((1, D), lambda b, s, k: (0, 0)),
            pl.BlockSpec((tm, 1), lambda b, s, k: (s, 0)),
            pl.BlockSpec((1, P, D), lambda b, s, k: (b, 0, 0)),
            pl.BlockSpec((1, tm, D), lambda b, s, k: (b, s, 0)),
        ],
        out_specs=pl.BlockSpec((1, tm, D), lambda b, s, k: (b, s, 0)),
        scratch_shapes=[pltpu.VMEM((tm, D), jnp.float32)],
        compiler_params=_mosaic_params(("parallel", "parallel", "arbitrary"), est2),
    )(attn_out, ymix, prep["w_out"], prep["b_out"], sid, gate, x_pad)

    return out_pad if S_pad == S else out_pad[:, :S]


# ------------------------------ pure-JAX reference -------------------------- #

def apply_rope_jax(xq, xk, freqs_cis):
    def _rope(x):
        xr = x.astype(jnp.float32).reshape(*x.shape[:-1], -1, 1, 2)
        out = freqs_cis[..., 0] * xr[..., 0] + freqs_cis[..., 1] * xr[..., 1]
        return out.reshape(x.shape).astype(x.dtype)
    return _rope(xq), _rope(xk)


def _expand_per_stage(t, hidden_length):
    segs = [jnp.repeat(t[:, i:i + 1], int(L), axis=1)
            for i, L in enumerate(hidden_length)]
    return jnp.concatenate(segs, axis=1)


def ref_forward(params, hidden_states, temb, hidden_length, attention_mask,
                image_rotary_emb, heads, head_dim):
    """Pure-JAX mixed-precision reference mirroring the kernels' bf16 matmul
    boundaries (bf16 operands, f32 accumulation, bf16 intermediates)."""
    f32, bf16 = jnp.float32, jnp.bfloat16
    B, S, D = hidden_states.shape
    residual = hidden_states

    wn, bn = params["norm_linear"]
    emb = jax.nn.silu(temb.astype(f32)) @ wn + bn
    shift, scale, gate = jnp.split(emb, 3, axis=-1)
    shift_t = _expand_per_stage(shift, hidden_length)
    scale_t = _expand_per_stage(scale, hidden_length)
    gate_t = _expand_per_stage(gate, hidden_length)

    x = hidden_states.astype(f32)
    mean = jnp.mean(x, axis=-1, keepdims=True)
    var = jnp.mean((x - mean) ** 2, axis=-1, keepdims=True)
    norm_hs = (x - mean) / jnp.sqrt(var + 1e-6)
    norm_hs = norm_hs * (1.0 + scale_t) + shift_t
    xn16 = norm_hs.astype(bf16)

    def mm(a16, wb):
        w, b = wb
        return jnp.dot(a16, w.astype(bf16), preferred_element_type=f32) + b

    mlp16 = _gelu_tanh(mm(xn16, params["proj_mlp"])).astype(bf16)
    q16 = mm(xn16, params["to_q"]).astype(bf16).reshape(B, S, heads, head_dim)
    k16 = mm(xn16, params["to_k"]).astype(bf16).reshape(B, S, heads, head_dim)
    v16 = mm(xn16, params["to_v"]).astype(bf16).reshape(B, S, heads, head_dim)

    def rms(x_, w):
        xf = x_.astype(f32)
        return (xf * lax.rsqrt(jnp.mean(xf * xf, axis=-1, keepdims=True) + 1e-6)
                * w.reshape(-1))

    qf = rms(q16, params["norm_q_w"])
    kf = rms(k16, params["norm_k_w"])

    sdpa_scale = 1.0 / math.sqrt(head_dim)
    out_segs = []
    i_sum = 0
    for i_p, L in enumerate(hidden_length):
        L = int(L)
        qs, ks = qf[:, i_sum:i_sum + L], kf[:, i_sum:i_sum + L]
        vs = v16[:, i_sum:i_sum + L]
        if image_rotary_emb is not None:
            qs, ks = apply_rope_jax(qs, ks, image_rotary_emb[i_p])
        qs = qs.astype(bf16).transpose(0, 2, 1, 3)
        ks = ks.astype(bf16).transpose(0, 2, 1, 3)
        vs = vs.transpose(0, 2, 1, 3)
        s = jnp.einsum("bhqd,bhkd->bhqk", qs, ks,
                       preferred_element_type=f32) * sdpa_scale + attention_mask[i_p]
        p = jax.nn.softmax(s, axis=-1)
        o = jnp.einsum("bhqk,bhkd->bhqd", p.astype(bf16), vs,
                       preferred_element_type=f32)
        out_segs.append(o.transpose(0, 2, 1, 3).reshape(B, L, heads * head_dim))
        i_sum += L
    attn16 = jnp.concatenate(out_segs, axis=1).astype(bf16)

    wo, bo = params["proj_out"]
    cat16 = jnp.concatenate([attn16, mlp16], axis=-1)
    y = jnp.dot(cat16, wo.astype(bf16), preferred_element_type=f32) + bo
    return residual + gate_t * y


# ----------------------------------- main ----------------------------------- #

def init_params(key, dim, head_dim, mlp_ratio=4.0):
    mlp_hidden = int(dim * mlp_ratio)
    keys = jax.random.split(key, 8)

    def lin(k, din, dout):
        kw, kb = jax.random.split(k)
        w = 0.02 * jax.random.normal(kw, (din, dout), jnp.float32)
        b = 0.01 * jax.random.normal(kb, (1, dout), jnp.float32)
        return w, b

    return {
        "norm_linear": lin(keys[0], dim, 3 * dim),
        "to_q": lin(keys[1], dim, dim),
        "to_k": lin(keys[2], dim, dim),
        "to_v": lin(keys[3], dim, dim),
        "proj_mlp": lin(keys[4], dim, mlp_hidden),
        "proj_out": lin(keys[5], dim + mlp_hidden, dim),
        "norm_q_w": 1.0 + 0.1 * jax.random.normal(keys[6], (1, head_dim), jnp.float32),
        "norm_k_w": 1.0 + 0.1 * jax.random.normal(keys[7], (1, head_dim), jnp.float32),
    }


def make_rope(length, head_dim):
    # [1, L, 1, Dh//2, 2, 2] rotation matrices, standard Flux layout
    half = head_dim // 2
    pos = np.arange(length, dtype=np.float32)[:, None]
    inv_freq = 1.0 / (10000.0 ** (np.arange(half, dtype=np.float32) * 2.0 / head_dim))
    ang = pos * inv_freq[None, :]
    cos, sin = np.cos(ang), np.sin(ang)
    fc = np.stack([np.stack([cos, -sin], axis=-1),
                   np.stack([sin, cos], axis=-1)], axis=-2)     # [L, half, 2, 2]
    return jnp.asarray(fc[None, :, None])                       # [1, L, 1, half, 2, 2]


if __name__ == "__main__":
    B, S, D = 2, 16, 128
    heads, head_dim = 4, 32
    hidden_length = [8, 8]          # varlen stages (sum == S)
    mlp_ratio = 4.0

    key = jax.random.PRNGKey(0)
    k_p, k_x, k_t, k_m = jax.random.split(key, 4)

    params = init_params(k_p, D, head_dim, mlp_ratio)
    prep = prepare_fused_params(params, heads, head_dim)

    hidden_states = jax.random.normal(k_x, (B, S, D), jnp.float32)
    temb = jax.random.normal(k_t, (B, len(hidden_length), D), jnp.float32)

    # per-stage additive attention masks [B, 1, L, L] (partial masking, diag kept)
    attention_mask = []
    mkeys = jax.random.split(k_m, len(hidden_length))
    for i, L in enumerate(hidden_length):
        r = jax.random.uniform(mkeys[i], (B, 1, L, L))
        m = jnp.where(r < 0.2, -1e9, 0.0).astype(jnp.float32)
        eye = jnp.eye(L, dtype=bool)[None, None]
        m = jnp.where(eye, 0.0, m)
        attention_mask.append(m)

    image_rotary_emb = [make_rope(L, head_dim) for L in hidden_length]

    out = flux_single_block_forward(prep, hidden_states, temb, hidden_length,
                                    attention_mask, image_rotary_emb, heads, head_dim)
    out = jax.block_until_ready(out)

    ref = ref_forward(params, hidden_states, temb, hidden_length,
                      attention_mask, image_rotary_emb, heads, head_dim)
    np.testing.assert_allclose(np.asarray(out), np.asarray(ref), rtol=5e-3, atol=5e-3)

    print("KERNEL_OK")
</pallas_src>

<mosaic_0001>
module attributes {stable_mosaic.version = 11 : i64} {
  func.func @_temb_emb_kernel(%arg0: memref<2x2x128xf32, #tpu.memory_space<vmem>>, %arg1: memref<128x384xf32, #tpu.memory_space<vmem>>, %arg2: memref<1x384xf32, #tpu.memory_space<vmem>>, %arg3: memref<2x2x384xf32, #tpu.memory_space<vmem>>) attributes {dimension_semantics = [], scalar_prefetch = 0 : i64, scratch_operands = 0 : i64, tpu.core_type = #tpu.core_type<tc>} {
    %c0 = arith.constant 0 : index
    %c0_0 = arith.constant 0 : index
    %c0_1 = arith.constant 0 : index
    %0 = vector.load %arg0[%c0, %c0_0, %c0_1] : memref<2x2x128xf32, #tpu.memory_space<vmem>>, vector<2x2x128xf32>
    %1 = arith.negf %0 : vector<2x2x128xf32>
    %2 = math.exp %1 : vector<2x2x128xf32>
    %cst = arith.constant 1.000000e+00 : f32
    %3 = vector.broadcast %cst : f32 to vector<2x2x128xf32>
    %4 = arith.addf %3, %2 : vector<2x2x128xf32>
    %5 = arith.divf %3, %4 : vector<2x2x128xf32>
    %6 = arith.mulf %0, %5 : vector<2x2x128xf32>
    %7 = vector.shape_cast %6 : vector<2x2x128xf32> to vector<4x128xf32>
    %c0_2 = arith.constant 0 : index
    %c0_3 = arith.constant 0 : index
    %8 = vector.load %arg1[%c0_2, %c0_3] : memref<128x384xf32, #tpu.memory_space<vmem>>, vector<128x384xf32>
    %cst_4 = arith.constant dense<0.000000e+00> : vector<4x384xf32>
    %9 = tpu.matmul %7, %8, %cst_4 {dimension_numbers = #tpu.dot_dimension_numbers<[1], [0], [0], [1], [0, 0, 1, 1], [], []>} : vector<4x128xf32>, vector<128x384xf32>, vector<4x384xf32> -> vector<4x384xf32>
    %c0_5 = arith.constant 0 : index
    %c0_6 = arith.constant 0 : index
    %10 = vector.load %arg2[%c0_5, %c0_6] : memref<1x384xf32, #tpu.memory_space<vmem>>, vector<1x384xf32>
    %11 = vector.broadcast %10 : vector<1x384xf32> to vector<4x384xf32>
    %12 = arith.addf %9, %11 : vector<4x384xf32>
    %13 = vector.shape_cast %12 : vector<4x384xf32> to vector<2x2x384xf32>
    %c0_7 = arith.constant 0 : index
    %c0_8 = arith.constant 0 : index
    %c0_9 = arith.constant 0 : index
    %14 = vector.load %arg3[%c0_7, %c0_8, %c0_9] : memref<2x2x384xf32, #tpu.memory_space<vmem>>, vector<2x2x384xf32>
    tpu.vector_store %arg3[%c0_7, %c0_8, %c0_9], %13 {strides = array<i32>} : memref<2x2x384xf32, #tpu.memory_space<vmem>>, vector<2x2x384xf32>,
    return
  }
}

</mosaic_0001>

<llo_original>
// kernel: tpu_custom_call.1
$region0: #{tpu_custom_call.1}
  #allocation0 [shape = 'u32[]', space=smem, size = 0x4, offset = 0x4, fixed_abs, tag = 'smem constant byte address 0x4 - core index']
  #allocation1 [shape = 'u32[144,128]{1,0:T(1,128)}', space=vmem, size = 0x12000, scoped, tag = 'internal scratch']
  %s0 = inlined_call_operand.hbm [shape: f32[2,2,128], index: 0, kind: input, shape index: {}]
  %s1 = inlined_call_operand.hbm [shape: f32[128,384], index: 1, kind: input, shape index: {}]
  %s2 = inlined_call_operand.vmem [shape: f32[1,384], index: 2, kind: input, shape index: {}]
  %s3 = inlined_call_operand.hbm [shape: f32[2,2,384], index: 3, kind: output, shape index: {}]
  %s4 = sld [smem:[#allocation0]]
  $region30: #{tpu_custom_call.1} parent=0
    _
  %s6 = ssub.s32 1, %s4
  %s7 = scalar_select 0, %s6, %s4
  $region1: #{tpu_custom_call.1} parent=0
    #allocation2 [shape = 'u8[2048]{0}', space=vmem, size = 0x800, scoped, tag = 'input window, operand 0, single buffered']
    #allocation3 [shape = 's32[1]{0}', space=sflag, size = 0x4, scoped, tag = 'scoped memory for tpu_custom_call.1']
    #allocation4 [shape = 's32[1]{0}', space=sflag, size = 0x4, scoped, tag = 'scoped memory for tpu_custom_call.1']
    #allocation5 [shape = 'u8[196608]{0}', space=vmem, size = 0x30000, scoped, tag = 'input window, operand 1, single buffered']
    #allocation6 [shape = 's32[1]{0}', space=sflag, size = 0x4, scoped, tag = 'scoped memory for tpu_custom_call.1']
    #allocation7 [shape = 'u8[6144]{0}', space=vmem, size = 0x1800, scoped, tag = 'output window, operand 0, single buffered']
    %8 = vsyncpa [#allocation3], 0
    %9 = vsyncpa [#allocation6], 0
    %10 = vsyncpa [#allocation4], 0
    // Predicated region
    $region2: #{tpu_custom_call.1} parent=1 // pred_check
      _
    $region3: #{tpu_custom_call.1} parent=1 // pred_check_branch
      %12 = sbr.rel (0) target = $region5
    $region4: #{tpu_custom_call.1} parent=1 // pred_region
      %s14 = ssub.s32 64, 64
      %15 = vsyncadd [#allocation3], %s14
      %s16 = sshll.u32 [#allocation2], 4
      %s17 = int_to_ptr.vmem [resolvable:$true] %s16
      %22 = dma.hbm_to_vmem [thread:$0]  %s0, 64, %s17, [#allocation3], 32, 32, 2
    $region5: #{tpu_custom_call.1} parent=1 // pred_fallthru
      _
    // Predicated region
    $region6: #{tpu_custom_call.1} parent=1 // pred_check
      _
    $region7: #{tpu_custom_call.1} parent=1 // pred_check_branch
      %24 = sbr.rel (0) target = $region9
    $region8: #{tpu_custom_call.1} parent=1 // pred_region
      %s26 = ssub.s32 6144, 6144
      %27 = vsyncadd [#allocation6], %s26
      %s28 = sshll.u32 [#allocation5], 4
      %s29 = int_to_ptr.vmem [resolvable:$true] %s28
      %34 = dma.hbm_to_vmem [thread:$0]  %s1, 6144, %s29, [#allocation6], 384, 384, 24
    $region9: #{tpu_custom_call.1} parent=1 // pred_fallthru
      _
    // Predicated region
    $region10: #{tpu_custom_call.1} parent=1 // pred_check
      _
    $region11: #{tpu_custom_call.1} parent=1 // pred_check_branch
      %36 = sbr.rel (0) target = $region13
    $region12: #{tpu_custom_call.1} parent=1 // pred_region
      _
    $region13: #{tpu_custom_call.1} parent=1 // pred_fallthru
      _
    // Predicated region
    $region14: #{tpu_custom_call.1} parent=1 // pred_check
      _
    $region15: #{tpu_custom_call.1} parent=1 // pred_check_branch
      %38 = sbr.rel (0) target = $region17
    $region16: #{tpu_custom_call.1} parent=1 // pred_region
      %39 = dma.done [#allocation3], 64
    $region17: #{tpu_custom_call.1} parent=1 // pred_fallthru
      _
    // Predicated region
    $region18: #{tpu_custom_call.1} parent=1 // pred_check
      _
    $region19: #{tpu_custom_call.1} parent=1 // pred_check_branch
      %41 = sbr.rel (0) target = $region21
    $region20: #{tpu_custom_call.1} parent=1 // pred_region
      %42 = dma.done [#allocation6], 6144
    $region21: #{tpu_custom_call.1} parent=1 // pred_fallthru
      _
    %v43 = vld [vmem:[#allocation2] sm:$0x3]
    %v44 = vld [vmem:[#allocation2 + $0x2] sm:$0x3]
    %v45 = vxor.u32 %v43, 2147483648
    %v46 = vxor.u32 %v44, 2147483648
    %v47 = vmul.f32 %v45, 1.442695
    %v48 = vpow.pop %v47
    %v49 = vmul.f32 %v46, 1.442695
    %v50 = vpow.pop %v49
    %v51 = vadd.f32 %v48, 1.0
    %v52 = vadd.f32 %v50, 1.0
    %v53 = vrcp.pop %v51
    %v54 = vmul.f32 1.0, %v53
    %v55 = vrcp.pop %v52
    %v56 = vmul.f32 1.0, %v55
    %v57 = vmul.f32 %v43, %v54
    %v58 = vmul.f32 %v44, %v56
    %v59 = vld [vmem:[#allocation5] sm:$0xff]
    %v60 = vld [vmem:[#allocation5 + $0x8] sm:$0xff]
    %v61 = vld [vmem:[#allocation5 + $0x10] sm:$0xff]
    %v62 = vld [vmem:[#allocation5 + $0x18] sm:$0xff]
    %v63 = vld [vmem:[#allocation5 + $0x20] sm:$0xff]
    %v64 = vld [vmem:[#allocation5 + $0x28] sm:$0xff]
    %v65 = vld [vmem:[#allocation5 + $0x30] sm:$0xff]
    %v66 = vld [vmem:[#allocation5 + $0x38] sm:$0xff]
    %v67 = vld [vmem:[#allocation5 + $0x40] sm:$0xff]
    %v68 = vld [vmem:[#allocation5 + $0x48] sm:$0xff]
    %v69 = vld [vmem:[#allocation5 + $0x50] sm:$0xff]
    %v70 = vld [vmem:[#allocation5 + $0x58] sm:$0xff]
    %v71 = vld [vmem:[#allocation5 + $0x60] sm:$0xff]
    %v72 = vld [vmem:[#allocation5 + $0x68] sm:$0xff]
    %v73 = vld [vmem:[#allocation5 + $0x70] sm:$0xff]
    %v74 = vld [vmem:[#allocation5 + $0x78] sm:$0xff]
    %v75 = vld [vmem:[#allocation5 + $0x80] sm:$0xff]
    %v76 = vld [vmem:[#allocation5 + $0x88] sm:$0xff]
    %v77 = vld [vmem:[#allocation5 + $0x90] sm:$0xff]
    %v78 = vld [vmem:[#allocation5 + $0x98] sm:$0xff]
    %v79 = vld [vmem:[#allocation5 + $0xa0] sm:$0xff]
    %v80 = vld [vmem:[#allocation5 + $0xa8] sm:$0xff]
    %v81 = vld [vmem:[#allocation5 + $0xb0] sm:$0xff]
    %v82 = vld [vmem:[#allocation5 + $0xb8] sm:$0xff]
    %v83 = vld [vmem:[#allocation5 + $0xc0] sm:$0xff]
    %v84 = vld [vmem:[#allocation5 + $0xc8] sm:$0xff]
    %v85 = vld [vmem:[#allocation5 + $0xd0] sm:$0xff]
    %v86 = vld [vmem:[#allocation5 + $0xd8] sm:$0xff]
    %v87 = vld [vmem:[#allocation5 + $0xe0] sm:$0xff]
    %v88 = vld [vmem:[#allocation5 + $0xe8] sm:$0xff]
    %v89 = vld [vmem:[#allocation5 + $0xf0] sm:$0xff]
    %v90 = vld [vmem:[#allocation5 + $0xf8] sm:$0xff]
    %v91 = vld [vmem:[#allocation5 + $0x100] sm:$0xff]
    %v92 = vld [vmem:[#allocation5 + $0x108] sm:$0xff]
    %v93 = vld [vmem:[#allocation5 + $0x110] sm:$0xff]
    %v94 = vld [vmem:[#allocation5 + $0x118] sm:$0xff]
    %v95 = vld [vmem:[#allocation5 + $0x120] sm:$0xff]
    %v96 = vld [vmem:[#allocation5 + $0x128] sm:$0xff]
    %v97 = vld [vmem:[#allocation5 + $0x130] sm:$0xff]
    %v98 = vld [vmem:[#allocation5 + $0x138] sm:$0xff]
    %v99 = vld [vmem:[#allocation5 + $0x140] sm:$0xff]
    %v100 = vld [vmem:[#allocation5 + $0x148] sm:$0xff]
    %v101 = vld [vmem:[#allocation5 + $0x150] sm:$0xff]
    %v102 = vld [vmem:[#allocation5 + $0x158] sm:$0xff]
    %v103 = vld [vmem:[#allocation5 + $0x160] sm:$0xff]
    %v104 = vld [vmem:[#allocation5 + $0x168] sm:$0xff]
    %v105 = vld [vmem:[#allocation5 + $0x170] sm:$0xff]
    %v106 = vld [vmem:[#allocation5 + $0x178] sm:$0xff]
    %v107 = vld [vmem:[%s2] sm:$0x7]
    %v109 = vlaneseq
    %v110 = vshrl.u32 %v109, 7
    %v111 = vsub.s32 0, %v110
    %v112 = vrot.slane %v107, %v111
    %v113 = vlaneseq
    %v114 = vshrl.u32 %v113, 7
    %v115 = vsub.s32 1, %v114
    %v116 = vrot.slane %v107, %v115
    %v117 = vlaneseq
    %v118 = vshrl.u32 %v117, 7
    %v119 = vsub.s32 2, %v118
    %v120 = vrot.slane %v107, %v119
    %v126 = vcombine.low %v57, %v58
    %v128 = vunpack.c.l.s4 1983009808
    %v129 = vunpack.c.0.s8 %v128
    %v130 = vlaneseq
    %v131 = vshrl.u32 %v130, 7
    %v132 = vsub.s32 %v129, %v131
    %v133 = vrot.slane %v126, %v132
    %135 = vmatprep.subr.mxu0 %v105
    %136 = vmatpush1.msra.mxu0 %v104
    %137 = vmatprep.subr.mxu0 %v102
    %138 = vmatpush1.msra.mxu0 %v101
    %139 = vmatprep.subr.mxu0 %v99
    %140 = vmatpush1.msra.mxu0 %v98
    %141 = vmatprep.subr.mxu0 %v96
    %142 = vmatpush1.msra.mxu0 %v95
    %143 = vmatprep.subr.mxu0 %v93
    %144 = vmatpush1.msra.mxu0 %v92
    %145 = vmatprep.subr.mxu0 %v90
    %146 = vmatpush1.msra.mxu0 %v89
    %147 = vmatprep.subr.mxu0 %v87
    %148 = vmatpush1.msra.mxu0 %v86
    %149 = vmatprep.subr.mxu0 %v84
    %150 = vmatpush1.msra.mxu0 %v83
    %151 = vmatprep.subr.mxu0 %v81
    %152 = vmatpush1.msra.mxu0 %v80
    %153 = vmatprep.subr.mxu0 %v78
    %154 = vmatpush1.msra.mxu0 %v77
    %155 = vmatprep.subr.mxu0 %v75
    %156 = vmatpush1.msra.mxu0 %v74
    %157 = vmatprep.subr.mxu0 %v72
    %158 = vmatpush1.msra.mxu0 %v71
    %159 = vmatprep.subr.mxu0 %v69
    %160 = vmatpush1.msra.mxu0 %v68
    %161 = vmatprep.subr.mxu0 %v66
    %162 = vmatpush1.msra.mxu0 %v65
    %163 = vmatprep.subr.mxu0 %v63
    %164 = vmatpush1.msra.mxu0 %v62
    %165 = vmatprep.subr.mxu0 %v60
    %166 = vmatpush1.msra.mxu0 %v59
    %167 = vmatprep.subr.mxu0 0.0
    %168 = vmatpush2.msra.mxu0 0.0
    %169 = vmatprep.subr.mxu0 0.0
    %170 = vmatpush2.msra.mxu0 0.0
    %171 = vmatprep.subr.mxu0 0.0
    %172 = vmatpush2.msra.mxu0 0.0
    %173 = vmatprep.subr.mxu0 0.0
    %174 = vmatpush2.msra.mxu0 0.0
    %175 = vmatprep.subr.mxu0 0.0
    %176 = vmatpush2.msra.mxu0 0.0
    %177 = vmatprep.subr.mxu0 0.0
    %178 = vmatpush2.msra.mxu0 0.0
    %179 = vmatprep.subr.mxu0 0.0
    %180 = vmatpush2.msra.mxu0 0.0
    %181 = vmatprep.subr.mxu0 0.0
    %182 = vmatpush2.msra.mxu0 0.0
    %183 = vmatprep.subr.mxu0 0.0
    %184 = vmatpush2.msra.mxu0 0.0
    %185 = vmatprep.subr.mxu0 0.0
    %186 = vmatpush2.msra.mxu0 0.0
    %187 = vmatprep.subr.mxu0 0.0
    %188 = vmatpush2.msra.mxu0 0.0
    %189 = vmatprep.subr.mxu0 0.0
    %190 = vmatpush2.msra.mxu0 0.0
    %191 = vmatprep.subr.mxu0 0.0
    %192 = vmatpush2.msra.mxu0 0.0
    %193 = vmatprep.subr.mxu0 0.0
    %194 = vmatpush2.msra.mxu0 0.0
    %195 = vmatprep.subr.mxu0 0.0
    %196 = vmatpush2.msra.mxu0 0.0
    %197 = vmatprep.subr.mxu0 0.0
    %198 = vmatpush2.msra.mxu0 0.0
    %199 = vmatprep.mubr.f32.mxu0 0.0
    %200 = vmatmul.mubr.f32.gmra.mxu0 %v133
    %v201 = vpop.f32.mrf.mxu0
    %v202 = vadd.f32 %v112, %v201
    %v203 = vpop.f32.mrf.mxu0
    %v204 = vadd.f32 %v116, %v203
    %205 = vdwg.mxu0
    %206 = vmatprep.subr.mxu0 0.0
    %207 = vmatpush1.msra.mxu0 %v106
    %208 = vmatprep.subr.mxu0 0.0
    %209 = vmatpush1.msra.mxu0 %v103
    %210 = vmatprep.subr.mxu0 0.0
    %211 = vmatpush1.msra.mxu0 %v100
    %212 = vmatprep.subr.mxu0 0.0
    %213 = vmatpush1.msra.mxu0 %v97
    %214 = vmatprep.subr.mxu0 0.0
    %215 = vmatpush1.msra.mxu0 %v94
    %216 = vmatprep.subr.mxu0 0.0
    %217 = vmatpush1.msra.mxu0 %v91
    %218 = vmatprep.subr.mxu0 0.0
    %219 = vmatpush1.msra.mxu0 %v88
    %220 = vmatprep.subr.mxu0 0.0
    %221 = vmatpush1.msra.mxu0 %v85
    %222 = vmatprep.subr.mxu0 0.0
    %223 = vmatpush1.msra.mxu0 %v82
    %224 = vmatprep.subr.mxu0 0.0
    %225 = vmatpush1.msra.mxu0 %v79
    %226 = vmatprep.subr.mxu0 0.0
    %227 = vmatpush1.msra.mxu0 %v76
    %228 = vmatprep.subr.mxu0 0.0
    %229 = vmatpush1.msra.mxu0 %v73
    %230 = vmatprep.subr.mxu0 0.0
    %231 = vmatpush1.msra.mxu0 %v70
    %232 = vmatprep.subr.mxu0 0.0
    %233 = vmatpush1.msra.mxu0 %v67
    %234 = vmatprep.subr.mxu0 0.0
    %235 = vmatpush1.msra.mxu0 %v64
    %236 = vmatprep.subr.mxu0 0.0
    %237 = vmatpush1.msra.mxu0 %v61
    %238 = vmatprep.subr.mxu0 0.0
    %239 = vmatpush2.msra.mxu0 0.0
    %240 = vmatprep.subr.mxu0 0.0
    %241 = vmatpush2.msra.mxu0 0.0
    %242 = vmatprep.subr.mxu0 0.0
    %243 = vmatpush2.msra.mxu0 0.0
    %244 = vmatprep.subr.mxu0 0.0
    %245 = vmatpush2.msra.mxu0 0.0
    %246 = vmatprep.subr.mxu0 0.0
    %247 = vmatpush2.msra.mxu0 0.0
    %248 = vmatprep.subr.mxu0 0.0
    %249 = vmatpush2.msra.mxu0 0.0
    %250 = vmatprep.subr.mxu0 0.0
    %251 = vmatpush2.msra.mxu0 0.0
    %252 = vmatprep.subr.mxu0 0.0
    %253 = vmatpush2.msra.mxu0 0.0
    %254 = vmatprep.subr.mxu0 0.0
    %255 = vmatpush2.msra.mxu0 0.0
    %256 = vmatprep.subr.mxu0 0.0
    %257 = vmatpush2.msra.mxu0 0.0
    %258 = vmatprep.subr.mxu0 0.0
    %259 = vmatpush2.msra.mxu0 0.0
    %260 = vmatprep.subr.mxu0 0.0
    %261 = vmatpush2.msra.mxu0 0.0
    %262 = vmatprep.subr.mxu0 0.0
    %263 = vmatpush2.msra.mxu0 0.0
    %264 = vmatprep.subr.mxu0 0.0
    %265 = vmatpush2.msra.mxu0 0.0
    %266 = vmatprep.subr.mxu0 0.0
    %267 = vmatpush2.msra.mxu0 0.0
    %268 = vmatprep.subr.mxu0 0.0
    %269 = vmatpush2.msra.mxu0 0.0
    %270 = vmatprep.mubr.f32.mxu0 0.0
    %271 = vmatmul.mubr.f32.gmra.mxu0 %v133
    %v272 = vpop.f32.mrf.mxu0
    %v273 = vadd.f32 %v120, %v272
    %v274 = vpop.f32.mrf.mxu0
    %275 = vdwg.mxu0
    %v279 = vcombine.low %v202, %v204
    %v281 = vunpack.c.l.s4 1983009808
    %v282 = vunpack.c.0.s8 %v281
    %v283 = vlaneseq
    %v284 = vshrl.u32 %v283, 7
    %v285 = vsub.s32 %v282, %v284
    %v286 = vrot.slane %v279, %v285
    %v288 = vunpack.c.l.s4 1983009808
    %v289 = vunpack.c.0.s8 %v288
    %v290 = vlaneseq
    %v291 = vshrl.u32 %v290, 7
    %v292 = vsub.s32 %v289, %v291
    %v293 = vrot.slane %v273, %v292
    %v294 = vcombine.low %v286, %v293
    %v295 = vcombine.high %v286, %v293
    %298 = vst [vmem:[#allocation7] sm:$0x3f] %v294
    %299 = vst [vmem:[#allocation7 + $0x6] sm:$0x3f] %v295
    // Predicated region
    $region22: #{tpu_custom_call.1} parent=1 // pred_check
      _
    $region23: #{tpu_custom_call.1} parent=1 // pred_check_branch
      %301 = sbr.rel (0) target = $region25
    $region24: #{tpu_custom_call.1} parent=1 // pred_region
      %s303 = ssub.s32 192, 192
      %304 = vsyncadd [#allocation4], %s303
      %s305 = sshll.u32 [#allocation7], 4
      %s306 = int_to_ptr.vmem [resolvable:$true] %s305
      %311 = dma.vmem_to_hbm [thread:$0]  %s306, 192, %s3, [#allocation4], 96, 96, 6
    $region25: #{tpu_custom_call.1} parent=1 // pred_fallthru
      _
    // Predicated region
    $region26: #{tpu_custom_call.1} parent=1 // pred_check
      _
    $region27: #{tpu_custom_call.1} parent=1 // pred_check_branch
      %313 = sbr.rel (0) target = $region29
    $region28: #{tpu_custom_call.1} parent=1 // pred_region
      %314 = dma.done [#allocation4], 192
    $region29: #{tpu_custom_call.1} parent=1 // pred_fallthru
      _
    %315 = vsyncpa [#allocation3], 1
    %316 = vsyncpa [#allocation6], 1
    %317 = vsyncpa [#allocation4], 1

</llo_original>
